<compile_context>
chip_gen: v5e
topology: v5e:2x2
jax: 0.10.0
libtpu: 0.0.40
codegen_flags: <defaults>
</compile_context>

<pallas_src>
import jax
import jax.numpy as jnp
from jax.experimental import pallas as pl
from jax.experimental.pallas import tpu as pltpu


MIN_PALLAS_ELEMS = 1 << 20  # below ~1M elements, fused XLA elementwise wins


def adjust_kernel(scale_ref, bias_ref, x_ref, o_ref):
    # scale_ref / bias_ref: SMEM (1,) float32 -> |scale[num_samples-1]|, bias[num_samples-1]
    # x_ref / o_ref:        VMEM (tr, tc) tiles
    s = scale_ref[0]
    b = bias_ref[0]
    o_ref[...] = (x_ref[...] * s + b).astype(o_ref.dtype)


def _default_block_rows():
    try:
        kind = jax.devices()[0].device_kind.lower()
    except Exception:
        kind = ""
    # v7x: ~3.2 TB/s HBM -> ~4 MiB f32 blocks to amortize the ~0.35 us/step overhead.
    if "v7" in kind or "7x" in kind:
        return 1024
    # v5e / v6e: 2 MiB blocks (8 MiB of double-buffered in+out) fit v5e's 16 MiB scoped VMEM.
    return 512


def _pick_lane_width(n, max_cols):
    """Largest multiple of 128 <= max_cols that divides n (requires n % 128 == 0)."""
    c = (max_cols // 128) * 128
    while c > 128:
        if n % c == 0:
            return c
        c -= 128
    return 128


def adjust_layer_forward(x, scale, bias, num_samples, *,
                         block_rows=None, block_cols=1024, force_pallas=False):
    """y = x * |scale[num_samples-1]| + bias[num_samples-1]

    x: any-shape array; scale/bias: (num_adjust, 1); num_samples: Python int.
    """
    # num_samples is a Python int -> select the broadcast scalars at trace time.
    s = jnp.abs(scale.reshape(-1)[num_samples - 1]).astype(jnp.float32)
    b = bias.reshape(-1)[num_samples - 1].astype(jnp.float32)

    n = x.size
    if n == 0:
        return x

    # Small-input fast path: keep it fusable with producers/consumers in XLA.
    if not force_pallas and n < MIN_PALLAS_ELEMS:
        return (x * s + b).astype(x.dtype)

    if block_rows is None:
        block_rows = _default_block_rows()

    orig_shape = x.shape
    xf = x.reshape(-1)

    # Lane-dense 2D slab. Prefer a lane width that divides n so the reshape is
    # zero-copy (no jnp.pad / output-slice HBM round-trips).
    if n % 128 == 0:
        tc = _pick_lane_width(n, block_cols)
        n_padded = n
    else:
        tc = min(block_cols, 1024)
        n_padded = pl.cdiv(n, tc) * tc
        xf = jnp.pad(xf, (0, n_padded - n))   # ragged sizes only (rare)

    rows = n_padded // tc
    x2 = xf.reshape(rows, tc)

    # Row tile: full extent if small, else the (8,128)-aligned block size.
    tr = rows if rows < block_rows else block_rows
    grid = (pl.cdiv(rows, tr),)               # partial last block masked by Pallas

    itemsize = jnp.dtype(x.dtype).itemsize
    scale_s = s.reshape(1)
    bias_s = b.reshape(1)

    out2 = pl.pallas_call(
        adjust_kernel,
        out_shape=jax.ShapeDtypeStruct((rows, tc), x.dtype),
        grid=grid,
        in_specs=[
            pl.BlockSpec(memory_space=pltpu.MemorySpace.SMEM),   # |scale| scalar
            pl.BlockSpec(memory_space=pltpu.MemorySpace.SMEM),   # bias scalar
            pl.BlockSpec((tr, tc), lambda i: (i, 0)),            # x tile
        ],
        out_specs=pl.BlockSpec((tr, tc), lambda i: (i, 0)),
        compiler_params=pltpu.CompilerParams(
            dimension_semantics=("parallel",),                   # megacore on v7x
        ),
        cost_estimate=pl.CostEstimate(
            flops=2 * n_padded,
            transcendentals=0,
            bytes_accessed=2 * n_padded * itemsize,              # read x + write y
        ),
    )(scale_s, bias_s, x2)

    out_flat = out2.reshape(-1)
    if n_padded != n:
        out_flat = out_flat[:n]
    return out_flat.reshape(orig_shape)


if __name__ == "__main__":
    # Deterministic parameter init, mirroring AdjustLayer.__init__
    init_scale = 6.0
    init_bias = 0.0
    num_adjust = 5
    scale = jnp.full((num_adjust, 1), init_scale, dtype=jnp.float32)   # (num_adjust, 1)
    bias = jnp.full((num_adjust, 1), init_bias, dtype=jnp.float32)     # (num_adjust, 1)

    # Make parameters slightly non-trivial (still deterministic) so abs() matters.
    scale = scale * jnp.arange(1, num_adjust + 1, dtype=jnp.float32)[:, None] * (-1.0)
    bias = bias + 0.25 * jnp.arange(num_adjust, dtype=jnp.float32)[:, None]

    key = jax.random.PRNGKey(0)
    num_samples = 3

    def ref(xx):
        return xx * jnp.abs(scale[num_samples - 1]) + bias[num_samples - 1]

    # 1) Small NCHW activation forced through the Pallas kernel (zero-copy tc path).
    x = jax.random.normal(key, (2, 4, 16, 16), dtype=jnp.float32)      # n = 2048
    y = jax.block_until_ready(adjust_layer_forward(x, scale, bias, num_samples,
                                                   force_pallas=True))
    assert y.shape == x.shape
    assert jnp.allclose(y, ref(x), atol=1e-6, rtol=1e-6)

    # 2) Ragged size (n % 128 != 0) exercises the minimal-pad path.
    x2 = jax.random.normal(jax.random.PRNGKey(1), (2, 3, 17, 19), dtype=jnp.float32)
    y2 = jax.block_until_ready(adjust_layer_forward(x2, scale, bias, num_samples,
                                                    force_pallas=True))
    assert jnp.allclose(y2, ref(x2), atol=1e-6, rtol=1e-6)

    # 3) Small-input fast path (plain fused XLA elementwise).
    y3 = jax.block_until_ready(adjust_layer_forward(x, scale, bias, num_samples))
    assert jnp.allclose(y3, ref(x), atol=1e-6, rtol=1e-6)

    print("KERNEL_OK")
</pallas_src>

<mosaic_0001>
module attributes {stable_mosaic.version = 11 : i64} {
  func.func @adjust_kernel(%arg0: i32, %arg1: memref<1xf32, #tpu.memory_space<smem>>, %arg2: memref<1xf32, #tpu.memory_space<smem>>, %arg3: memref<2x1024xf32, #tpu.memory_space<vmem>>, %arg4: memref<2x1024xf32, #tpu.memory_space<vmem>>) attributes {dimension_semantics = [#tpu.dimension_semantics<parallel>], iteration_bounds = array<i64: 1>, scalar_prefetch = 0 : i64, scratch_operands = 0 : i64, tpu.core_type = #tpu.core_type<tc>, window_params = [{transform_indices = @transform_0, window_bounds = array<i64: 1>}, {transform_indices = @transform_1, window_bounds = array<i64: 1>}, {transform_indices = @transform_2, window_bounds = array<i64: 2, 1024>}, {transform_indices = @transform_3, window_bounds = array<i64: 2, 1024>}]} {
    %c0 = arith.constant 0 : index
    %0 = memref.load %arg1[%c0] : memref<1xf32, #tpu.memory_space<smem>>
    %c0_0 = arith.constant 0 : index
    %1 = memref.load %arg2[%c0_0] : memref<1xf32, #tpu.memory_space<smem>>
    %c0_1 = arith.constant 0 : index
    %c0_2 = arith.constant 0 : index
    %2 = vector.load %arg3[%c0_1, %c0_2] : memref<2x1024xf32, #tpu.memory_space<vmem>>, vector<2x1024xf32>
    %3 = vector.broadcast %0 : f32 to vector<2x1024xf32>
    %4 = arith.mulf %2, %3 : vector<2x1024xf32>
    %5 = vector.broadcast %1 : f32 to vector<2x1024xf32>
    %6 = arith.addf %4, %5 : vector<2x1024xf32>
    %c0_3 = arith.constant 0 : index
    %c0_4 = arith.constant 0 : index
    %7 = vector.load %arg4[%c0_3, %c0_4] : memref<2x1024xf32, #tpu.memory_space<vmem>>, vector<2x1024xf32>
    tpu.vector_store %arg4[%c0_3, %c0_4], %6 {strides = array<i32>} : memref<2x1024xf32, #tpu.memory_space<vmem>>, vector<2x1024xf32>,
    return
  }
  func.func @transform_0(%arg0: i32) -> i32 {
    %c0_i32 = arith.constant 0 : i32
    %c0_i32_0 = arith.constant 0 : i32
    return %c0_i32 : i32
  }
  func.func @transform_1(%arg0: i32) -> i32 {
    %c0_i32 = arith.constant 0 : i32
    %c0_i32_0 = arith.constant 0 : i32
    return %c0_i32 : i32
  }
  func.func @transform_2(%arg0: i32) -> (i32, i32) {
    %c0_i32 = arith.constant 0 : i32
    %c0_i32_0 = arith.constant 0 : i32
    return %arg0, %c0_i32 : i32, i32
  }
  func.func @transform_3(%arg0: i32) -> (i32, i32) {
    %c0_i32 = arith.constant 0 : i32
    %c0_i32_0 = arith.constant 0 : i32
    return %arg0, %c0_i32 : i32, i32
  }
}

</mosaic_0001>

<llo_original>
// kernel: tpu_custom_call.1
$region0: #{tpu_custom_call.1}
  #allocation0 [shape = 'u32[]', space=smem, size = 0x4, offset = 0x4, fixed_abs, tag = 'smem constant byte address 0x4 - core index']
  #allocation1 [shape = 'u32[72,128]{1,0:T(1,128)}', space=vmem, size = 0x9000, scoped, tag = 'internal scratch']
  #allocation2 [shape = 'f32[1]{0:T(128)S(6)}', space=smem, size = 0x200, scoped, tag = 'scoped memory for tpu_custom_call.1']
  #allocation3 [shape = 'f32[1]{0:T(128)S(6)}', space=smem, size = 0x200, scoped, tag = 'scoped memory for tpu_custom_call.1']
  %s0 = inlined_call_operand.<no memory space> [shape: f32[1], index: 0, kind: input, shape index: {}]
  %s1 = inlined_call_operand.<no memory space> [shape: f32[1], index: 1, kind: input, shape index: {}]
  %s2 = inlined_call_operand.hbm [shape: f32[2,1024], index: 2, kind: input, shape index: {}]
  %s3 = inlined_call_operand.hbm [shape: f32[2,1024], index: 3, kind: output, shape index: {}]
  %s4 = sld [smem:[#allocation0]]
  $region26: #{tpu_custom_call.1} parent=0
    _
  %s6 = ssub.s32 1, %s4
  %s7 = scalar_select 0, %s6, %s4
  %8 = sst [smem:[#allocation2]] %s0
  %9 = sst [smem:[#allocation3]] %s1
  $region1: #{tpu_custom_call.1} parent=0
    #allocation4 [shape = 'u8[8192]{0}', space=vmem, size = 0x2000, scoped, tag = 'input window, operand 2, single buffered']
    #allocation5 [shape = 's32[1]{0}', space=sflag, size = 0x4, scoped, tag = 'scoped memory for tpu_custom_call.1']
    #allocation6 [shape = 's32[1]{0}', space=sflag, size = 0x4, scoped, tag = 'scoped memory for tpu_custom_call.1']
    #allocation7 [shape = 'u8[8192]{0}', space=vmem, size = 0x2000, scoped, tag = 'output window, operand 0, single buffered']
    %10 = vsyncpa [#allocation5], 0
    %11 = vsyncpa [#allocation6], 0
    // Predicated region
    $region2: #{tpu_custom_call.1} parent=1 // pred_check
      _
    $region3: #{tpu_custom_call.1} parent=1 // pred_check_branch
      %13 = sbr.rel (0) target = $region5
    $region4: #{tpu_custom_call.1} parent=1 // pred_region
      _
    $region5: #{tpu_custom_call.1} parent=1 // pred_fallthru
      _
    // Predicated region
    $region6: #{tpu_custom_call.1} parent=1 // pred_check
      _
    $region7: #{tpu_custom_call.1} parent=1 // pred_check_branch
      %15 = sbr.rel (0) target = $region9
    $region8: #{tpu_custom_call.1} parent=1 // pred_region
      _
    $region9: #{tpu_custom_call.1} parent=1 // pred_fallthru
      _
    // Predicated region
    $region10: #{tpu_custom_call.1} parent=1 // pred_check
      _
    $region11: #{tpu_custom_call.1} parent=1 // pred_check_branch
      %17 = sbr.rel (0) target = $region13
    $region12: #{tpu_custom_call.1} parent=1 // pred_region
      %19 = vsyncadd [#allocation5], 0
      %s21 = sshll.u32 %s2, 4
      %s22 = int_to_ptr.hbm [resolvable:$true] %s21
      %s23 = sshll.u32 [#allocation4], 4
      %s24 = int_to_ptr.vmem [resolvable:$true] %s23
      %26 = dma.hbm_to_vmem [thread:$0]  %s22, 256, %s24, [#allocation5]
    $region13: #{tpu_custom_call.1} parent=1 // pred_fallthru
      _
    // Predicated region
    $region14: #{tpu_custom_call.1} parent=1 // pred_check
      _
    $region15: #{tpu_custom_call.1} parent=1 // pred_check_branch
      %28 = sbr.rel (0) target = $region17
    $region16: #{tpu_custom_call.1} parent=1 // pred_region
      %30 = dma.done [#allocation5], 256
    $region17: #{tpu_custom_call.1} parent=1 // pred_fallthru
      _
    %s31 = sld [smem:[#allocation2]]
    %s32 = sld [smem:[#allocation3]]
    %v33 = vld [vmem:[#allocation4] sm:$0xff]
    %v34 = vld [vmem:[#allocation4 + $0x8] sm:$0xff]
    %v35 = vstv %s31
    %v36 = vmul.f32 %v33, %v35
    %v37 = vmul.f32 %v34, %v35
    %v38 = vstv %s32
    %v39 = vadd.f32 %v36, %v38
    %v40 = vadd.f32 %v37, %v38
    %41 = vst [vmem:[#allocation7] sm:$0xff] %v39
    %42 = vst [vmem:[#allocation7 + $0x8] sm:$0xff] %v40
    // Predicated region
    $region18: #{tpu_custom_call.1} parent=1 // pred_check
      _
    $region19: #{tpu_custom_call.1} parent=1 // pred_check_branch
      %44 = sbr.rel (0) target = $region21
    $region20: #{tpu_custom_call.1} parent=1 // pred_region
      %46 = vsyncadd [#allocation6], 0
      %s48 = sshll.u32 [#allocation7], 4
      %s49 = int_to_ptr.vmem [resolvable:$true] %s48
      %s50 = sshll.u32 %s3, 4
      %s51 = int_to_ptr.hbm [resolvable:$true] %s50
      %53 = dma.vmem_to_hbm [thread:$0]  %s49, 256, %s51, [#allocation6]
    $region21: #{tpu_custom_call.1} parent=1 // pred_fallthru
      _
    // Predicated region
    $region22: #{tpu_custom_call.1} parent=1 // pred_check
      _
    $region23: #{tpu_custom_call.1} parent=1 // pred_check_branch
      %55 = sbr.rel (0) target = $region25
    $region24: #{tpu_custom_call.1} parent=1 // pred_region
      %57 = dma.done [#allocation6], 256
    $region25: #{tpu_custom_call.1} parent=1 // pred_fallthru
      _
    %58 = vsyncpa [#allocation5], 1
    %59 = vsyncpa [#allocation6], 1

</llo_original>
